<compile_context>
chip_gen: v7x
topology: tpu7x:2x2x1
jax: 0.10.0
libtpu: 0.0.40
codegen_flags: <defaults>
</compile_context>

<pallas_src>
import math

import jax
import jax.numpy as jnp
import numpy as np
from jax import lax
from jax.experimental import pallas as pl
from jax.experimental.pallas import tpu as pltpu


# --------------------------------------------------------------------------
# Pallas kernel: whole sequence handled in a single invocation.
# --------------------------------------------------------------------------
def _gru_kernel(
    x_ref,      # (S*B, I)   inputs, time-major flattened
    h0_ref,     # (B, H)     initial hidden state
    w_ih_ref,   # (I, 3H)    packed, transposed input->gate weights  [r|z|n]
    w_hh_ref,   # (H, 3H)    packed, transposed hidden->gate weights [r|z|n]
    b_x_ref,    # (1, 3H)    b_ih with b_hr/b_hz folded in           [r|z|n]
    b_h_ref,    # (1, 3H)    [0 | 0 | b_hn]   (b_hn must stay inside r*(...))
    w_lin_ref,  # (H, O)     linear head weight (transposed)
    b_lin_ref,  # (1, O)     linear head bias
    out_ref,    # (S*B, O)   per-timestep outputs, time-major flattened
):
    B, H = h0_ref.shape
    S = x_ref.shape[0] // B

    # ---- Phase 1: input projection for ALL timesteps (one big matmul). -----
    gi_all = (
        jnp.dot(x_ref[...], w_ih_ref[...], preferred_element_type=jnp.float32)
        + b_x_ref[...]
    )  # (S*B, 3H)

    w_hh = w_hh_ref[...]   # hoisted once; reused every step
    b_h = b_h_ref[...]

    # ---- Phase 2: sequential recurrence, one fused (H,3H) matmul per step. -
    # S is small & static here, so a fully unrolled static loop keeps every
    # slice/store static and gives the scheduler full visibility.
    # (For long sequences, switch to lax.fori_loop over a VMEM scratch.)
    h = h0_ref[...].astype(jnp.float32)          # (B, H)
    hs = []
    for t in range(S):
        gi = gi_all[t * B:(t + 1) * B]           # (B, 3H), static slice
        gh = jnp.dot(h, w_hh, preferred_element_type=jnp.float32) + b_h
        r = jax.nn.sigmoid(gi[:, 0:H] + gh[:, 0:H])
        z = jax.nn.sigmoid(gi[:, H:2 * H] + gh[:, H:2 * H])
        n = jnp.tanh(gi[:, 2 * H:3 * H] + r * gh[:, 2 * H:3 * H])
        h = (1.0 - z) * n + z * h
        hs.append(h)

    h_all = jnp.concatenate(hs, axis=0)          # (S*B, H), time-major

    # ---- Phase 3: linear head for ALL timesteps (one big matmul). ----------
    y = (
        jnp.dot(h_all, w_lin_ref[...], preferred_element_type=jnp.float32)
        + b_lin_ref[...]
    )
    out_ref[...] = y.astype(out_ref.dtype)


# --------------------------------------------------------------------------
# One-time parameter packing (outside the traced path): split/transpose the
# PyTorch-packed (3H, .) weights, pre-add the r/z biases.
# --------------------------------------------------------------------------
def pack_params(params):
    H = params["w_hh"].shape[1]
    w_ih, w_hh = params["w_ih"], params["w_hh"]      # (3H, I), (3H, H)
    b_ih, b_hh = params["b_ih"], params["b_hh"]      # (3H,),   (3H,)
    zeros_h = jnp.zeros((H,), b_hh.dtype)
    return {
        "w_ih_p": jnp.asarray(w_ih.T),                                        # (I, 3H)
        "w_hh_p": jnp.asarray(w_hh.T),                                        # (H, 3H)
        # r/z gates: (b_ir + b_hr), (b_iz + b_hz) can be summed up-front.
        "b_x": (b_ih + jnp.concatenate([b_hh[: 2 * H], zeros_h]))[None, :],   # (1, 3H)
        # n gate: b_hn must stay inside r * (h W_hn^T + b_hn).
        "b_h": jnp.concatenate([zeros_h, zeros_h, b_hh[2 * H:]])[None, :],    # (1, 3H)
        "w_lin_t": jnp.asarray(params["w_lin"].T),                            # (H, O)
        "b_lin": params["b_lin"][None, :],                                    # (1, O)
    }


# --------------------------------------------------------------------------
# Wrapper: batch_first (B, S, I) in, (B, S, O) out, like the PyTorch module.
# --------------------------------------------------------------------------
@jax.jit
def baseline_gru_pallas(x_bsi, h0, packed):
    B, S, I = x_bsi.shape
    H = packed["w_hh_p"].shape[0]
    O = packed["w_lin_t"].shape[1]

    # Time-major, flattened to 2D so the kernel only sees lane-friendly 2D ops.
    x_sb = jnp.transpose(x_bsi, (1, 0, 2)).reshape(S * B, I)
    h0_bh = h0.reshape(B, H)

    vmem = lambda: pl.BlockSpec(memory_space=pltpu.MemorySpace.VMEM)

    out2d = pl.pallas_call(
        _gru_kernel,
        out_shape=jax.ShapeDtypeStruct((S * B, O), x_bsi.dtype),
        in_specs=[vmem() for _ in range(8)],
        out_specs=vmem(),
    )(
        x_sb, h0_bh,
        packed["w_ih_p"], packed["w_hh_p"],
        packed["b_x"], packed["b_h"],
        packed["w_lin_t"], packed["b_lin"],
    )

    return jnp.transpose(out2d.reshape(S, B, O), (1, 0, 2))   # (B, S, O)


# --------------------------------------------------------------------------
# Pure-JAX reference (lax.scan) for correctness checking.
# --------------------------------------------------------------------------
def baseline_gru_ref(x_bsi, h0, params):
    B, S, I = x_bsi.shape
    H = params["w_hh"].shape[1]
    w_ih, w_hh = params["w_ih"], params["w_hh"]
    b_ih, b_hh = params["b_ih"], params["b_hh"]

    def step(h, x_t):
        gi = x_t @ w_ih.T + b_ih           # (B, 3H)
        gh = h @ w_hh.T + b_hh             # (B, 3H)
        r = jax.nn.sigmoid(gi[:, 0:H] + gh[:, 0:H])
        z = jax.nn.sigmoid(gi[:, H:2 * H] + gh[:, H:2 * H])
        n = jnp.tanh(gi[:, 2 * H:] + r * gh[:, 2 * H:])
        h_new = (1.0 - z) * n + z * h
        return h_new, h_new

    h0_bh = h0.reshape(B, H)
    _, hs = lax.scan(step, h0_bh, jnp.transpose(x_bsi, (1, 0, 2)))
    hs = jnp.transpose(hs, (1, 0, 2))      # (B, S, H)
    return hs @ params["w_lin"].T + params["b_lin"]


# --------------------------------------------------------------------------
# Deterministic parameter init (mirrors nn.GRU / nn.Linear shapes & U(-k, k)).
# --------------------------------------------------------------------------
def init_params(key, input_size, hidden_size, output_size):
    k_gru = 1.0 / math.sqrt(hidden_size)
    k_lin = 1.0 / math.sqrt(hidden_size)
    keys = jax.random.split(key, 6)
    u = lambda k, shape, bound: jax.random.uniform(
        k, shape, jnp.float32, minval=-bound, maxval=bound)
    return {
        "w_ih": u(keys[0], (3 * hidden_size, input_size), k_gru),
        "w_hh": u(keys[1], (3 * hidden_size, hidden_size), k_gru),
        "b_ih": u(keys[2], (3 * hidden_size,), k_gru),
        "b_hh": u(keys[3], (3 * hidden_size,), k_gru),
        "w_lin": u(keys[4], (output_size, hidden_size), k_lin),
        "b_lin": u(keys[5], (output_size,), k_lin),
    }


if __name__ == "__main__":
    # Shapes implied by the module constants: input_size=20, hidden_size=15,
    # output_size=3, batch_size=1, num_layers=1; pick seq=8.
    input_size, hidden_size, output_size = 20, 15, 3
    batch_size, num_layers, seq_len = 1, 1, 8

    root = jax.random.PRNGKey(0)
    k_param, k_x, k_h0 = jax.random.split(root, 3)

    params = init_params(k_param, input_size, hidden_size, output_size)
    packed = pack_params(params)   # one-time packing, outside the jitted path

    x = jax.random.normal(k_x, (batch_size, seq_len, input_size), jnp.float32)
    h0 = jax.random.normal(k_h0, (num_layers, batch_size, hidden_size), jnp.float32)

    out = jax.block_until_ready(baseline_gru_pallas(x, h0, packed))
    ref = jax.block_until_ready(baseline_gru_ref(x, h0, params))

    assert out.shape == (batch_size, seq_len, output_size), out.shape
    np.testing.assert_allclose(np.asarray(out), np.asarray(ref), rtol=1e-5, atol=1e-5)
    print("KERNEL_OK")
</pallas_src>

<mosaic_0001>
module attributes {stable_mosaic.version = 11 : i64} {
  func.func @_gru_kernel(%arg0: memref<8x20xf32, #tpu.memory_space<vmem>>, %arg1: memref<1x15xf32, #tpu.memory_space<vmem>>, %arg2: memref<20x45xf32, #tpu.memory_space<vmem>>, %arg3: memref<15x45xf32, #tpu.memory_space<vmem>>, %arg4: memref<1x45xf32, #tpu.memory_space<vmem>>, %arg5: memref<1x45xf32, #tpu.memory_space<vmem>>, %arg6: memref<15x3xf32, #tpu.memory_space<vmem>>, %arg7: memref<1x3xf32, #tpu.memory_space<vmem>>, %arg8: memref<8x3xf32, #tpu.memory_space<vmem>>) attributes {dimension_semantics = [], scalar_prefetch = 0 : i64, scratch_operands = 0 : i64, tpu.core_type = #tpu.core_type<tc>} {
    %c0 = arith.constant 0 : index
    %c0_0 = arith.constant 0 : index
    %0 = vector.load %arg0[%c0, %c0_0] : memref<8x20xf32, #tpu.memory_space<vmem>>, vector<8x20xf32>
    %c0_1 = arith.constant 0 : index
    %c0_2 = arith.constant 0 : index
    %1 = vector.load %arg2[%c0_1, %c0_2] : memref<20x45xf32, #tpu.memory_space<vmem>>, vector<20x45xf32>
    %cst = arith.constant dense<0.000000e+00> : vector<8x45xf32>
    %2 = tpu.matmul %0, %1, %cst {dimension_numbers = #tpu.dot_dimension_numbers<[1], [0], [0], [1], [0, 0, 1, 1], [], []>} : vector<8x20xf32>, vector<20x45xf32>, vector<8x45xf32> -> vector<8x45xf32>
    %c0_3 = arith.constant 0 : index
    %c0_4 = arith.constant 0 : index
    %3 = vector.load %arg4[%c0_3, %c0_4] : memref<1x45xf32, #tpu.memory_space<vmem>>, vector<1x45xf32>
    %4 = vector.broadcast %3 : vector<1x45xf32> to vector<8x45xf32>
    %5 = arith.addf %2, %4 : vector<8x45xf32>
    %c0_5 = arith.constant 0 : index
    %c0_6 = arith.constant 0 : index
    %6 = vector.load %arg3[%c0_5, %c0_6] : memref<15x45xf32, #tpu.memory_space<vmem>>, vector<15x45xf32>
    %c0_7 = arith.constant 0 : index
    %c0_8 = arith.constant 0 : index
    %7 = vector.load %arg5[%c0_7, %c0_8] : memref<1x45xf32, #tpu.memory_space<vmem>>, vector<1x45xf32>
    %c0_9 = arith.constant 0 : index
    %c0_10 = arith.constant 0 : index
    %8 = vector.load %arg1[%c0_9, %c0_10] : memref<1x15xf32, #tpu.memory_space<vmem>>, vector<1x15xf32>
    %9 = vector.extract_strided_slice %5 {offsets = [0, 0], sizes = [1, 45], strides = [1, 1]} : vector<8x45xf32> to vector<1x45xf32>
    %cst_11 = arith.constant dense<0.000000e+00> : vector<1x45xf32>
    %10 = tpu.matmul %8, %6, %cst_11 {dimension_numbers = #tpu.dot_dimension_numbers<[1], [0], [0], [1], [0, 0, 1, 1], [], []>} : vector<1x15xf32>, vector<15x45xf32>, vector<1x45xf32> -> vector<1x45xf32>
    %11 = arith.addf %10, %7 : vector<1x45xf32>
    %12 = vector.extract_strided_slice %9 {offsets = [0, 0], sizes = [1, 15], strides = [1, 1]} : vector<1x45xf32> to vector<1x15xf32>
    %13 = vector.extract_strided_slice %11 {offsets = [0, 0], sizes = [1, 15], strides = [1, 1]} : vector<1x45xf32> to vector<1x15xf32>
    %14 = arith.addf %12, %13 : vector<1x15xf32>
    %15 = arith.negf %14 : vector<1x15xf32>
    %16 = math.exp %15 : vector<1x15xf32>
    %cst_12 = arith.constant 1.000000e+00 : f32
    %17 = vector.broadcast %cst_12 : f32 to vector<1x15xf32>
    %18 = arith.addf %17, %16 : vector<1x15xf32>
    %19 = arith.divf %17, %18 : vector<1x15xf32>
    %20 = vector.extract_strided_slice %9 {offsets = [0, 15], sizes = [1, 15], strides = [1, 1]} : vector<1x45xf32> to vector<1x15xf32>
    %21 = vector.extract_strided_slice %11 {offsets = [0, 15], sizes = [1, 15], strides = [1, 1]} : vector<1x45xf32> to vector<1x15xf32>
    %22 = arith.addf %20, %21 : vector<1x15xf32>
    %23 = arith.negf %22 : vector<1x15xf32>
    %24 = math.exp %23 : vector<1x15xf32>
    %cst_13 = arith.constant 1.000000e+00 : f32
    %25 = vector.broadcast %cst_13 : f32 to vector<1x15xf32>
    %26 = arith.addf %25, %24 : vector<1x15xf32>
    %27 = arith.divf %25, %26 : vector<1x15xf32>
    %28 = vector.extract_strided_slice %9 {offsets = [0, 30], sizes = [1, 15], strides = [1, 1]} : vector<1x45xf32> to vector<1x15xf32>
    %29 = vector.extract_strided_slice %11 {offsets = [0, 30], sizes = [1, 15], strides = [1, 1]} : vector<1x45xf32> to vector<1x15xf32>
    %30 = arith.mulf %19, %29 : vector<1x15xf32>
    %31 = arith.addf %28, %30 : vector<1x15xf32>
    %32 = math.tanh %31 : vector<1x15xf32>
    %cst_14 = arith.constant 1.000000e+00 : f32
    %33 = vector.broadcast %cst_14 : f32 to vector<1x15xf32>
    %34 = arith.subf %33, %27 : vector<1x15xf32>
    %35 = arith.mulf %34, %32 : vector<1x15xf32>
    %36 = arith.mulf %27, %8 : vector<1x15xf32>
    %37 = arith.addf %35, %36 : vector<1x15xf32>
    %38 = vector.extract_strided_slice %5 {offsets = [1, 0], sizes = [1, 45], strides = [1, 1]} : vector<8x45xf32> to vector<1x45xf32>
    %cst_15 = arith.constant dense<0.000000e+00> : vector<1x45xf32>
    %39 = tpu.matmul %37, %6, %cst_15 {dimension_numbers = #tpu.dot_dimension_numbers<[1], [0], [0], [1], [0, 0, 1, 1], [], []>} : vector<1x15xf32>, vector<15x45xf32>, vector<1x45xf32> -> vector<1x45xf32>
    %40 = arith.addf %39, %7 : vector<1x45xf32>
    %41 = vector.extract_strided_slice %38 {offsets = [0, 0], sizes = [1, 15], strides = [1, 1]} : vector<1x45xf32> to vector<1x15xf32>
    %42 = vector.extract_strided_slice %40 {offsets = [0, 0], sizes = [1, 15], strides = [1, 1]} : vector<1x45xf32> to vector<1x15xf32>
    %43 = arith.addf %41, %42 : vector<1x15xf32>
    %44 = arith.negf %43 : vector<1x15xf32>
    %45 = math.exp %44 : vector<1x15xf32>
    %cst_16 = arith.constant 1.000000e+00 : f32
    %46 = vector.broadcast %cst_16 : f32 to vector<1x15xf32>
    %47 = arith.addf %46, %45 : vector<1x15xf32>
    %48 = arith.divf %46, %47 : vector<1x15xf32>
    %49 = vector.extract_strided_slice %38 {offsets = [0, 15], sizes = [1, 15], strides = [1, 1]} : vector<1x45xf32> to vector<1x15xf32>
    %50 = vector.extract_strided_slice %40 {offsets = [0, 15], sizes = [1, 15], strides = [1, 1]} : vector<1x45xf32> to vector<1x15xf32>
    %51 = arith.addf %49, %50 : vector<1x15xf32>
    %52 = arith.negf %51 : vector<1x15xf32>
    %53 = math.exp %52 : vector<1x15xf32>
    %cst_17 = arith.constant 1.000000e+00 : f32
    %54 = vector.broadcast %cst_17 : f32 to vector<1x15xf32>
    %55 = arith.addf %54, %53 : vector<1x15xf32>
    %56 = arith.divf %54, %55 : vector<1x15xf32>
    %57 = vector.extract_strided_slice %38 {offsets = [0, 30], sizes = [1, 15], strides = [1, 1]} : vector<1x45xf32> to vector<1x15xf32>
    %58 = vector.extract_strided_slice %40 {offsets = [0, 30], sizes = [1, 15], strides = [1, 1]} : vector<1x45xf32> to vector<1x15xf32>
    %59 = arith.mulf %48, %58 : vector<1x15xf32>
    %60 = arith.addf %57, %59 : vector<1x15xf32>
    %61 = math.tanh %60 : vector<1x15xf32>
    %cst_18 = arith.constant 1.000000e+00 : f32
    %62 = vector.broadcast %cst_18 : f32 to vector<1x15xf32>
    %63 = arith.subf %62, %56 : vector<1x15xf32>
    %64 = arith.mulf %63, %61 : vector<1x15xf32>
    %65 = arith.mulf %56, %37 : vector<1x15xf32>
    %66 = arith.addf %64, %65 : vector<1x15xf32>
    %67 = vector.extract_strided_slice %5 {offsets = [2, 0], sizes = [1, 45], strides = [1, 1]} : vector<8x45xf32> to vector<1x45xf32>
    %cst_19 = arith.constant dense<0.000000e+00> : vector<1x45xf32>
    %68 = tpu.matmul %66, %6, %cst_19 {dimension_numbers = #tpu.dot_dimension_numbers<[1], [0], [0], [1], [0, 0, 1, 1], [], []>} : vector<1x15xf32>, vector<15x45xf32>, vector<1x45xf32> -> vector<1x45xf32>
    %69 = arith.addf %68, %7 : vector<1x45xf32>
    %70 = vector.extract_strided_slice %67 {offsets = [0, 0], sizes = [1, 15], strides = [1, 1]} : vector<1x45xf32> to vector<1x15xf32>
    %71 = vector.extract_strided_slice %69 {offsets = [0, 0], sizes = [1, 15], strides = [1, 1]} : vector<1x45xf32> to vector<1x15xf32>
    %72 = arith.addf %70, %71 : vector<1x15xf32>
    %73 = arith.negf %72 : vector<1x15xf32>
    %74 = math.exp %73 : vector<1x15xf32>
    %cst_20 = arith.constant 1.000000e+00 : f32
    %75 = vector.broadcast %cst_20 : f32 to vector<1x15xf32>
    %76 = arith.addf %75, %74 : vector<1x15xf32>
    %77 = arith.divf %75, %76 : vector<1x15xf32>
    %78 = vector.extract_strided_slice %67 {offsets = [0, 15], sizes = [1, 15], strides = [1, 1]} : vector<1x45xf32> to vector<1x15xf32>
    %79 = vector.extract_strided_slice %69 {offsets = [0, 15], sizes = [1, 15], strides = [1, 1]} : vector<1x45xf32> to vector<1x15xf32>
    %80 = arith.addf %78, %79 : vector<1x15xf32>
    %81 = arith.negf %80 : vector<1x15xf32>
    %82 = math.exp %81 : vector<1x15xf32>
    %cst_21 = arith.constant 1.000000e+00 : f32
    %83 = vector.broadcast %cst_21 : f32 to vector<1x15xf32>
    %84 = arith.addf %83, %82 : vector<1x15xf32>
    %85 = arith.divf %83, %84 : vector<1x15xf32>
    %86 = vector.extract_strided_slice %67 {offsets = [0, 30], sizes = [1, 15], strides = [1, 1]} : vector<1x45xf32> to vector<1x15xf32>
    %87 = vector.extract_strided_slice %69 {offsets = [0, 30], sizes = [1, 15], strides = [1, 1]} : vector<1x45xf32> to vector<1x15xf32>
    %88 = arith.mulf %77, %87 : vector<1x15xf32>
    %89 = arith.addf %86, %88 : vector<1x15xf32>
    %90 = math.tanh %89 : vector<1x15xf32>
    %cst_22 = arith.constant 1.000000e+00 : f32
    %91 = vector.broadcast %cst_22 : f32 to vector<1x15xf32>
    %92 = arith.subf %91, %85 : vector<1x15xf32>
    %93 = arith.mulf %92, %90 : vector<1x15xf32>
    %94 = arith.mulf %85, %66 : vector<1x15xf32>
    %95 = arith.addf %93, %94 : vector<1x15xf32>
    %96 = vector.extract_strided_slice %5 {offsets = [3, 0], sizes = [1, 45], strides = [1, 1]} : vector<8x45xf32> to vector<1x45xf32>
    %cst_23 = arith.constant dense<0.000000e+00> : vector<1x45xf32>
    %97 = tpu.matmul %95, %6, %cst_23 {dimension_numbers = #tpu.dot_dimension_numbers<[1], [0], [0], [1], [0, 0, 1, 1], [], []>} : vector<1x15xf32>, vector<15x45xf32>, vector<1x45xf32> -> vector<1x45xf32>
    %98 = arith.addf %97, %7 : vector<1x45xf32>
    %99 = vector.extract_strided_slice %96 {offsets = [0, 0], sizes = [1, 15], strides = [1, 1]} : vector<1x45xf32> to vector<1x15xf32>
    %100 = vector.extract_strided_slice %98 {offsets = [0, 0], sizes = [1, 15], strides = [1, 1]} : vector<1x45xf32> to vector<1x15xf32>
    %101 = arith.addf %99, %100 : vector<1x15xf32>
    %102 = arith.negf %101 : vector<1x15xf32>
    %103 = math.exp %102 : vector<1x15xf32>
    %cst_24 = arith.constant 1.000000e+00 : f32
    %104 = vector.broadcast %cst_24 : f32 to vector<1x15xf32>
    %105 = arith.addf %104, %103 : vector<1x15xf32>
    %106 = arith.divf %104, %105 : vector<1x15xf32>
    %107 = vector.extract_strided_slice %96 {offsets = [0, 15], sizes = [1, 15], strides = [1, 1]} : vector<1x45xf32> to vector<1x15xf32>
    %108 = vector.extract_strided_slice %98 {offsets = [0, 15], sizes = [1, 15], strides = [1, 1]} : vector<1x45xf32> to vector<1x15xf32>
    %109 = arith.addf %107, %108 : vector<1x15xf32>
    %110 = arith.negf %109 : vector<1x15xf32>
    %111 = math.exp %110 : vector<1x15xf32>
    %cst_25 = arith.constant 1.000000e+00 : f32
    %112 = vector.broadcast %cst_25 : f32 to vector<1x15xf32>
    %113 = arith.addf %112, %111 : vector<1x15xf32>
    %114 = arith.divf %112, %113 : vector<1x15xf32>
    %115 = vector.extract_strided_slice %96 {offsets = [0, 30], sizes = [1, 15], strides = [1, 1]} : vector<1x45xf32> to vector<1x15xf32>
    %116 = vector.extract_strided_slice %98 {offsets = [0, 30], sizes = [1, 15], strides = [1, 1]} : vector<1x45xf32> to vector<1x15xf32>
    %117 = arith.mulf %106, %116 : vector<1x15xf32>
    %118 = arith.addf %115, %117 : vector<1x15xf32>
    %119 = math.tanh %118 : vector<1x15xf32>
    %cst_26 = arith.constant 1.000000e+00 : f32
    %120 = vector.broadcast %cst_26 : f32 to vector<1x15xf32>
    %121 = arith.subf %120, %114 : vector<1x15xf32>
    %122 = arith.mulf %121, %119 : vector<1x15xf32>
    %123 = arith.mulf %114, %95 : vector<1x15xf32>
    %124 = arith.addf %122, %123 : vector<1x15xf32>
    %125 = vector.extract_strided_slice %5 {offsets = [4, 0], sizes = [1, 45], strides = [1, 1]} : vector<8x45xf32> to vector<1x45xf32>
    %cst_27 = arith.constant dense<0.000000e+00> : vector<1x45xf32>
    %126 = tpu.matmul %124, %6, %cst_27 {dimension_numbers = #tpu.dot_dimension_numbers<[1], [0], [0], [1], [0, 0, 1, 1], [], []>} : vector<1x15xf32>, vector<15x45xf32>, vector<1x45xf32> -> vector<1x45xf32>
    %127 = arith.addf %126, %7 : vector<1x45xf32>
    %128 = vector.extract_strided_slice %125 {offsets = [0, 0], sizes = [1, 15], strides = [1, 1]} : vector<1x45xf32> to vector<1x15xf32>
    %129 = vector.extract_strided_slice %127 {offsets = [0, 0], sizes = [1, 15], strides = [1, 1]} : vector<1x45xf32> to vector<1x15xf32>
    %130 = arith.addf %128, %129 : vector<1x15xf32>
    %131 = arith.negf %130 : vector<1x15xf32>
    %132 = math.exp %131 : vector<1x15xf32>
    %cst_28 = arith.constant 1.000000e+00 : f32
    %133 = vector.broadcast %cst_28 : f32 to vector<1x15xf32>
    %134 = arith.addf %133, %132 : vector<1x15xf32>
    %135 = arith.divf %133, %134 : vector<1x15xf32>
    %136 = vector.extract_strided_slice %125 {offsets = [0, 15], sizes = [1, 15], strides = [1, 1]} : vector<1x45xf32> to vector<1x15xf32>
    %137 = vector.extract_strided_slice %127 {offsets = [0, 15], sizes = [1, 15], strides = [1, 1]} : vector<1x45xf32> to vector<1x15xf32>
    %138 = arith.addf %136, %137 : vector<1x15xf32>
    %139 = arith.negf %138 : vector<1x15xf32>
    %140 = math.exp %139 : vector<1x15xf32>
    %cst_29 = arith.constant 1.000000e+00 : f32
    %141 = vector.broadcast %cst_29 : f32 to vector<1x15xf32>
    %142 = arith.addf %141, %140 : vector<1x15xf32>
    %143 = arith.divf %141, %142 : vector<1x15xf32>
    %144 = vector.extract_strided_slice %125 {offsets = [0, 30], sizes = [1, 15], strides = [1, 1]} : vector<1x45xf32> to vector<1x15xf32>
    %145 = vector.extract_strided_slice %127 {offsets = [0, 30], sizes = [1, 15], strides = [1, 1]} : vector<1x45xf32> to vector<1x15xf32>
    %146 = arith.mulf %135, %145 : vector<1x15xf32>
    %147 = arith.addf %144, %146 : vector<1x15xf32>
    %148 = math.tanh %147 : vector<1x15xf32>
    %cst_30 = arith.constant 1.000000e+00 : f32
    %149 = vector.broadcast %cst_30 : f32 to vector<1x15xf32>
    %150 = arith.subf %149, %143 : vector<1x15xf32>
    %151 = arith.mulf %150, %148 : vector<1x15xf32>
    %152 = arith.mulf %143, %124 : vector<1x15xf32>
    %153 = arith.addf %151, %152 : vector<1x15xf32>
    %154 = vector.extract_strided_slice %5 {offsets = [5, 0], sizes = [1, 45], strides = [1, 1]} : vector<8x45xf32> to vector<1x45xf32>
    %cst_31 = arith.constant dense<0.000000e+00> : vector<1x45xf32>
    %155 = tpu.matmul %153, %6, %cst_31 {dimension_numbers = #tpu.dot_dimension_numbers<[1], [0], [0], [1], [0, 0, 1, 1], [], []>} : vector<1x15xf32>, vector<15x45xf32>, vector<1x45xf32> -> vector<1x45xf32>
    %156 = arith.addf %155, %7 : vector<1x45xf32>
    %157 = vector.extract_strided_slice %154 {offsets = [0, 0], sizes = [1, 15], strides = [1, 1]} : vector<1x45xf32> to vector<1x15xf32>
    %158 = vector.extract_strided_slice %156 {offsets = [0, 0], sizes = [1, 15], strides = [1, 1]} : vector<1x45xf32> to vector<1x15xf32>
    %159 = arith.addf %157, %158 : vector<1x15xf32>
    %160 = arith.negf %159 : vector<1x15xf32>
    %161 = math.exp %160 : vector<1x15xf32>
    %cst_32 = arith.constant 1.000000e+00 : f32
    %162 = vector.broadcast %cst_32 : f32 to vector<1x15xf32>
    %163 = arith.addf %162, %161 : vector<1x15xf32>
    %164 = arith.divf %162, %163 : vector<1x15xf32>
    %165 = vector.extract_strided_slice %154 {offsets = [0, 15], sizes = [1, 15], strides = [1, 1]} : vector<1x45xf32> to vector<1x15xf32>
    %166 = vector.extract_strided_slice %156 {offsets = [0, 15], sizes = [1, 15], strides = [1, 1]} : vector<1x45xf32> to vector<1x15xf32>
    %167 = arith.addf %165, %166 : vector<1x15xf32>
    %168 = arith.negf %167 : vector<1x15xf32>
    %169 = math.exp %168 : vector<1x15xf32>
    %cst_33 = arith.constant 1.000000e+00 : f32
    %170 = vector.broadcast %cst_33 : f32 to vector<1x15xf32>
    %171 = arith.addf %170, %169 : vector<1x15xf32>
    %172 = arith.divf %170, %171 : vector<1x15xf32>
    %173 = vector.extract_strided_slice %154 {offsets = [0, 30], sizes = [1, 15], strides = [1, 1]} : vector<1x45xf32> to vector<1x15xf32>
    %174 = vector.extract_strided_slice %156 {offsets = [0, 30], sizes = [1, 15], strides = [1, 1]} : vector<1x45xf32> to vector<1x15xf32>
    %175 = arith.mulf %164, %174 : vector<1x15xf32>
    %176 = arith.addf %173, %175 : vector<1x15xf32>
    %177 = math.tanh %176 : vector<1x15xf32>
    %cst_34 = arith.constant 1.000000e+00 : f32
    %178 = vector.broadcast %cst_34 : f32 to vector<1x15xf32>
    %179 = arith.subf %178, %172 : vector<1x15xf32>
    %180 = arith.mulf %179, %177 : vector<1x15xf32>
    %181 = arith.mulf %172, %153 : vector<1x15xf32>
    %182 = arith.addf %180, %181 : vector<1x15xf32>
    %183 = vector.extract_strided_slice %5 {offsets = [6, 0], sizes = [1, 45], strides = [1, 1]} : vector<8x45xf32> to vector<1x45xf32>
    %cst_35 = arith.constant dense<0.000000e+00> : vector<1x45xf32>
    %184 = tpu.matmul %182, %6, %cst_35 {dimension_numbers = #tpu.dot_dimension_numbers<[1], [0], [0], [1], [0, 0, 1, 1], [], []>} : vector<1x15xf32>, vector<15x45xf32>, vector<1x45xf32> -> vector<1x45xf32>
    %185 = arith.addf %184, %7 : vector<1x45xf32>
    %186 = vector.extract_strided_slice %183 {offsets = [0, 0], sizes = [1, 15], strides = [1, 1]} : vector<1x45xf32> to vector<1x15xf32>
    %187 = vector.extract_strided_slice %185 {offsets = [0, 0], sizes = [1, 15], strides = [1, 1]} : vector<1x45xf32> to vector<1x15xf32>
    %188 = arith.addf %186, %187 : vector<1x15xf32>
    %189 = arith.negf %188 : vector<1x15xf32>
    %190 = math.exp %189 : vector<1x15xf32>
    %cst_36 = arith.constant 1.000000e+00 : f32
    %191 = vector.broadcast %cst_36 : f32 to vector<1x15xf32>
    %192 = arith.addf %191, %190 : vector<1x15xf32>
    %193 = arith.divf %191, %192 : vector<1x15xf32>
    %194 = vector.extract_strided_slice %183 {offsets = [0, 15], sizes = [1, 15], strides = [1, 1]} : vector<1x45xf32> to vector<1x15xf32>
    %195 = vector.extract_strided_slice %185 {offsets = [0, 15], sizes = [1, 15], strides = [1, 1]} : vector<1x45xf32> to vector<1x15xf32>
    %196 = arith.addf %194, %195 : vector<1x15xf32>
    %197 = arith.negf %196 : vector<1x15xf32>
    %198 = math.exp %197 : vector<1x15xf32>
    %cst_37 = arith.constant 1.000000e+00 : f32
    %199 = vector.broadcast %cst_37 : f32 to vector<1x15xf32>
    %200 = arith.addf %199, %198 : vector<1x15xf32>
    %201 = arith.divf %199, %200 : vector<1x15xf32>
    %202 = vector.extract_strided_slice %183 {offsets = [0, 30], sizes = [1, 15], strides = [1, 1]} : vector<1x45xf32> to vector<1x15xf32>
    %203 = vector.extract_strided_slice %185 {offsets = [0, 30], sizes = [1, 15], strides = [1, 1]} : vector<1x45xf32> to vector<1x15xf32>
    %204 = arith.mulf %193, %203 : vector<1x15xf32>
    %205 = arith.addf %202, %204 : vector<1x15xf32>
    %206 = math.tanh %205 : vector<1x15xf32>
    %cst_38 = arith.constant 1.000000e+00 : f32
    %207 = vector.broadcast %cst_38 : f32 to vector<1x15xf32>
    %208 = arith.subf %207, %201 : vector<1x15xf32>
    %209 = arith.mulf %208, %206 : vector<1x15xf32>
    %210 = arith.mulf %201, %182 : vector<1x15xf32>
    %211 = arith.addf %209, %210 : vector<1x15xf32>
    %212 = vector.extract_strided_slice %5 {offsets = [7, 0], sizes = [1, 45], strides = [1, 1]} : vector<8x45xf32> to vector<1x45xf32>
    %cst_39 = arith.constant dense<0.000000e+00> : vector<1x45xf32>
    %213 = tpu.matmul %211, %6, %cst_39 {dimension_numbers = #tpu.dot_dimension_numbers<[1], [0], [0], [1], [0, 0, 1, 1], [], []>} : vector<1x15xf32>, vector<15x45xf32>, vector<1x45xf32> -> vector<1x45xf32>
    %214 = arith.addf %213, %7 : vector<1x45xf32>
    %215 = vector.extract_strided_slice %212 {offsets = [0, 0], sizes = [1, 15], strides = [1, 1]} : vector<1x45xf32> to vector<1x15xf32>
    %216 = vector.extract_strided_slice %214 {offsets = [0, 0], sizes = [1, 15], strides = [1, 1]} : vector<1x45xf32> to vector<1x15xf32>
    %217 = arith.addf %215, %216 : vector<1x15xf32>
    %218 = arith.negf %217 : vector<1x15xf32>
    %219 = math.exp %218 : vector<1x15xf32>
    %cst_40 = arith.constant 1.000000e+00 : f32
    %220 = vector.broadcast %cst_40 : f32 to vector<1x15xf32>
    %221 = arith.addf %220, %219 : vector<1x15xf32>
    %222 = arith.divf %220, %221 : vector<1x15xf32>
    %223 = vector.extract_strided_slice %212 {offsets = [0, 15], sizes = [1, 15], strides = [1, 1]} : vector<1x45xf32> to vector<1x15xf32>
    %224 = vector.extract_strided_slice %214 {offsets = [0, 15], sizes = [1, 15], strides = [1, 1]} : vector<1x45xf32> to vector<1x15xf32>
    %225 = arith.addf %223, %224 : vector<1x15xf32>
    %226 = arith.negf %225 : vector<1x15xf32>
    %227 = math.exp %226 : vector<1x15xf32>
    %cst_41 = arith.constant 1.000000e+00 : f32
    %228 = vector.broadcast %cst_41 : f32 to vector<1x15xf32>
    %229 = arith.addf %228, %227 : vector<1x15xf32>
    %230 = arith.divf %228, %229 : vector<1x15xf32>
    %231 = vector.extract_strided_slice %212 {offsets = [0, 30], sizes = [1, 15], strides = [1, 1]} : vector<1x45xf32> to vector<1x15xf32>
    %232 = vector.extract_strided_slice %214 {offsets = [0, 30], sizes = [1, 15], strides = [1, 1]} : vector<1x45xf32> to vector<1x15xf32>
    %233 = arith.mulf %222, %232 : vector<1x15xf32>
    %234 = arith.addf %231, %233 : vector<1x15xf32>
    %235 = math.tanh %234 : vector<1x15xf32>
    %cst_42 = arith.constant 1.000000e+00 : f32
    %236 = vector.broadcast %cst_42 : f32 to vector<1x15xf32>
    %237 = arith.subf %236, %230 : vector<1x15xf32>
    %238 = arith.mulf %237, %235 : vector<1x15xf32>
    %239 = arith.mulf %230, %211 : vector<1x15xf32>
    %240 = arith.addf %238, %239 : vector<1x15xf32>
    %241 = tpu.concatenate %37, %66, %95, %124, %153, %182, %211, %240 in 0 : vector<1x15xf32>, vector<1x15xf32>, vector<1x15xf32>, vector<1x15xf32>, vector<1x15xf32>, vector<1x15xf32>, vector<1x15xf32>, vector<1x15xf32> -> vector<8x15xf32>
    %c0_43 = arith.constant 0 : index
    %c0_44 = arith.constant 0 : index
    %242 = vector.load %arg6[%c0_43, %c0_44] : memref<15x3xf32, #tpu.memory_space<vmem>>, vector<15x3xf32>
    %cst_45 = arith.constant dense<0.000000e+00> : vector<8x3xf32>
    %243 = tpu.matmul %241, %242, %cst_45 {dimension_numbers = #tpu.dot_dimension_numbers<[1], [0], [0], [1], [0, 0, 1, 1], [], []>} : vector<8x15xf32>, vector<15x3xf32>, vector<8x3xf32> -> vector<8x3xf32>
    %c0_46 = arith.constant 0 : index
    %c0_47 = arith.constant 0 : index
    %244 = vector.load %arg7[%c0_46, %c0_47] : memref<1x3xf32, #tpu.memory_space<vmem>>, vector<1x3xf32>
    %245 = vector.broadcast %244 : vector<1x3xf32> to vector<8x3xf32>
    %246 = arith.addf %243, %245 : vector<8x3xf32>
    %c0_48 = arith.constant 0 : index
    %c0_49 = arith.constant 0 : index
    %247 = vector.load %arg8[%c0_48, %c0_49] : memref<8x3xf32, #tpu.memory_space<vmem>>, vector<8x3xf32>
    tpu.vector_store %arg8[%c0_48, %c0_49], %246 {strides = array<i32>} : memref<8x3xf32, #tpu.memory_space<vmem>>, vector<8x3xf32>,
    return
  }
}

</mosaic_0001>

<llo_original>
// kernel: baseline_gru_pallas.1
$region0: #{baseline_gru_pallas.1}
  #allocation0 [shape = 'u32[]', space=smem, size = 0x4, offset = 0x4, fixed_abs, tag = 'smem constant byte address 0x4 - core index']
  #allocation1 [shape = 'u32[144,128]{1,0:T(1,128)}', space=vmem, size = 0x12000, scoped, tag = 'internal scratch']
  %s0 = inlined_call_operand.hbm [shape: f32[8,20], index: 0, kind: input, shape index: {}]
  %s1 = inlined_call_operand.vmem [shape: f32[1,15], index: 1, kind: input, shape index: {}]
  %s2 = inlined_call_operand.vmem [shape: f32[20,45], index: 2, kind: input, shape index: {}]
  %s3 = inlined_call_operand.vmem [shape: f32[15,45], index: 3, kind: input, shape index: {}]
  %s4 = inlined_call_operand.vmem [shape: f32[1,45], index: 4, kind: input, shape index: {}]
  %s5 = inlined_call_operand.vmem [shape: f32[1,45], index: 5, kind: input, shape index: {}]
  %s6 = inlined_call_operand.vmem [shape: f32[15,3], index: 6, kind: input, shape index: {}]
  %s7 = inlined_call_operand.vmem [shape: f32[1,3], index: 7, kind: input, shape index: {}]
  %s8 = inlined_call_operand.vmem [shape: f32[8,3], index: 8, kind: output, shape index: {}]
  %s9 = sld [smem:[#allocation0]]
  $region46: #{baseline_gru_pallas.1} parent=0
    _
  %s11 = ssub.s32 1, %s9
  %s12 = scalar_select 0, %s11, %s9
  $region1: #{baseline_gru_pallas.1} parent=0
    #allocation2 [shape = 'u8[4096]{0}', space=vmem, size = 0x1000, scoped, tag = 'input window, operand 0, single buffered']
    #allocation3 [shape = 's32[1]{0}', space=sflag, size = 0x4, scoped, tag = 'scoped memory for baseline_gru_pallas.1']
    %13 = vsyncpa [#allocation3], 0
    // Predicated region
    $region2: #{baseline_gru_pallas.1} parent=1 // pred_check
      _
    $region3: #{baseline_gru_pallas.1} parent=1 // pred_check_branch
      %15 = sbr.rel (0) target = $region5
    $region4: #{baseline_gru_pallas.1} parent=1 // pred_region
      %s17 = ssub.s32 128, 128
      %18 = vsyncadd [#allocation3], %s17
      %s20 = sshll.u32 [#allocation2], 4
      %s21 = int_to_ptr.vmem [resolvable:$true] %s20
      %23 = dma.hbm_to_vmem [thread:$0]  %s0, 128, %s21, [#allocation3]
    $region5: #{baseline_gru_pallas.1} parent=1 // pred_fallthru
      _
    // Predicated region
    $region6: #{baseline_gru_pallas.1} parent=1 // pred_check
      _
    $region7: #{baseline_gru_pallas.1} parent=1 // pred_check_branch
      %25 = sbr.rel (0) target = $region9
    $region8: #{baseline_gru_pallas.1} parent=1 // pred_region
      _
    $region9: #{baseline_gru_pallas.1} parent=1 // pred_fallthru
      _
    // Predicated region
    $region10: #{baseline_gru_pallas.1} parent=1 // pred_check
      _
    $region11: #{baseline_gru_pallas.1} parent=1 // pred_check_branch
      %27 = sbr.rel (0) target = $region13
    $region12: #{baseline_gru_pallas.1} parent=1 // pred_region
      _
    $region13: #{baseline_gru_pallas.1} parent=1 // pred_fallthru
      _
    // Predicated region
    $region14: #{baseline_gru_pallas.1} parent=1 // pred_check
      _
    $region15: #{baseline_gru_pallas.1} parent=1 // pred_check_branch
      %29 = sbr.rel (0) target = $region17
    $region16: #{baseline_gru_pallas.1} parent=1 // pred_region
      _
    $region17: #{baseline_gru_pallas.1} parent=1 // pred_fallthru
      _
    // Predicated region
    $region18: #{baseline_gru_pallas.1} parent=1 // pred_check
      _
    $region19: #{baseline_gru_pallas.1} parent=1 // pred_check_branch
      %31 = sbr.rel (0) target = $region21
    $region20: #{baseline_gru_pallas.1} parent=1 // pred_region
      _
    $region21: #{baseline_gru_pallas.1} parent=1 // pred_fallthru
      _
    // Predicated region
    $region22: #{baseline_gru_pallas.1} parent=1 // pred_check
      _
    $region23: #{baseline_gru_pallas.1} parent=1 // pred_check_branch
      %33 = sbr.rel (0) target = $region25
    $region24: #{baseline_gru_pallas.1} parent=1 // pred_region
      _
    $region25: #{baseline_gru_pallas.1} parent=1 // pred_fallthru
      _
    // Predicated region
    $region26: #{baseline_gru_pallas.1} parent=1 // pred_check
      _
    $region27: #{baseline_gru_pallas.1} parent=1 // pred_check_branch
      %35 = sbr.rel (0) target = $region29
    $region28: #{baseline_gru_pallas.1} parent=1 // pred_region
      _
    $region29: #{baseline_gru_pallas.1} parent=1 // pred_fallthru
      _
    // Predicated region
    $region30: #{baseline_gru_pallas.1} parent=1 // pred_check
      _
    $region31: #{baseline_gru_pallas.1} parent=1 // pred_check_branch
      %37 = sbr.rel (0) target = $region33
    $region32: #{baseline_gru_pallas.1} parent=1 // pred_region
      _
    $region33: #{baseline_gru_pallas.1} parent=1 // pred_fallthru
      _
    // Predicated region
    $region34: #{baseline_gru_pallas.1} parent=1 // pred_check
      _
    $region35: #{baseline_gru_pallas.1} parent=1 // pred_check_branch
      %39 = sbr.rel (0) target = $region37
    $region36: #{baseline_gru_pallas.1} parent=1 // pred_region
      %40 = dma.done [#allocation3], 128
    $region37: #{baseline_gru_pallas.1} parent=1 // pred_fallthru
      _
    %v41 = vld [vmem:[#allocation2] sm:$0xff]
    %v42 = vld [vmem:[%s2] sm:$0xff]
    %v43 = vld [vmem:[%s2 + $0x8] sm:$0xff]
    %v44 = vld [vmem:[%s2 + $0x10] sm:$0xf]
    %v45 = vld [vmem:[%s4] sm:$0x1]
    %v47 = vlaneseq
    %v48 = vshrl.u32 %v47, 7
    %v49 = vsub.s32 0, %v48
    %v50 = vrot.slane %v45, %v49
    %vm52 = vcmask 162816
    %v54 = vsel %vm52, %v41, 0
    %vm56 = vcmask 1043456
    %v58 = vsel %vm56, %v44, 0
    %60 = vmatprep.subr.mxu0 0.0
    %61 = vmatpush1.msra.mxu0 %v42
    %62 = vmatprep.subr.mxu0 0.0
    %63 = vmatpush1.msra.mxu0 %v43
    %64 = vmatprep.subr.mxu0 0.0
    %65 = vmatpush1.msra.mxu0 %v58
    %66 = vmatprep.subr.mxu0 0.0
    %67 = vmatpush1.msra.mxu0 0.0
    %68 = vmatprep.subr.mxu0 0.0
    %69 = vmatpush1.msra.mxu0 0.0
    %70 = vmatprep.subr.mxu0 0.0
    %71 = vmatpush1.msra.mxu0 0.0
    %72 = vmatprep.subr.mxu0 0.0
    %73 = vmatpush1.msra.mxu0 0.0
    %74 = vmatprep.subr.mxu0 0.0
    %75 = vmatpush1.msra.mxu0 0.0
    %76 = vmatprep.subr.mxu0 0.0
    %77 = vmatpush1.msra.mxu0 0.0
    %78 = vmatprep.subr.mxu0 0.0
    %79 = vmatpush1.msra.mxu0 0.0
    %80 = vmatprep.subr.mxu0 0.0
    %81 = vmatpush1.msra.mxu0 0.0
    %82 = vmatprep.subr.mxu0 0.0
    %83 = vmatpush1.msra.mxu0 0.0
    %84 = vmatprep.subr.mxu0 0.0
    %85 = vmatpush1.msra.mxu0 0.0
    %86 = vmatprep.subr.mxu0 0.0
    %87 = vmatpush1.msra.mxu0 0.0
    %88 = vmatprep.subr.mxu0 0.0
    %89 = vmatpush1.msra.mxu0 0.0
    %90 = vmatprep.subr.mxu0 0.0
    %91 = vmatpush1.msra.mxu0 0.0
    %92 = vmatprep.subr.mxu0 0.0
    %93 = vmatpush1.msra.mxu0 0.0
    %94 = vmatprep.subr.mxu0 0.0
    %95 = vmatpush1.msra.mxu0 0.0
    %96 = vmatprep.subr.mxu0 0.0
    %97 = vmatpush1.msra.mxu0 0.0
    %98 = vmatprep.subr.mxu0 0.0
    %99 = vmatpush1.msra.mxu0 0.0
    %100 = vmatprep.subr.mxu0 0.0
    %101 = vmatpush1.msra.mxu0 0.0
    %102 = vmatprep.subr.mxu0 0.0
    %103 = vmatpush1.msra.mxu0 0.0
    %104 = vmatprep.subr.mxu0 0.0
    %105 = vmatpush1.msra.mxu0 0.0
    %106 = vmatprep.subr.mxu0 0.0
    %107 = vmatpush1.msra.mxu0 0.0
    %108 = vmatprep.subr.mxu0 0.0
    %109 = vmatpush1.msra.mxu0 0.0
    %110 = vmatprep.subr.mxu0 0.0
    %111 = vmatpush1.msra.mxu0 0.0
    %112 = vmatprep.subr.mxu0 0.0
    %113 = vmatpush1.msra.mxu0 0.0
    %114 = vmatprep.subr.mxu0 0.0
    %115 = vmatpush1.msra.mxu0 0.0
    %116 = vmatprep.subr.mxu0 0.0
    %117 = vmatpush1.msra.mxu0 0.0
    %118 = vmatprep.subr.mxu0 0.0
    %119 = vmatpush1.msra.mxu0 0.0
    %120 = vmatprep.subr.mxu0 0.0
    %121 = vmatpush1.msra.mxu0 0.0
    %122 = vmatprep.subr.mxu0 0.0
    %123 = vmatpush1.msra.mxu0 0.0
    %124 = vmatprep.mubr.f32.mxu0 0.0
    %125 = vmatmul.mubr.f32.gmra.mrb[0].mxu0 %v54
    %v126 = vpop.f32.mrb[0].mxu0
    %v127 = vadd.f32 %v50, %v126
    %v128 = vpop.f32.mrb[0].mxu0
    %129 = vdwg.mxu0
    %v130 = vld [vmem:[%s3] sm:$0xff]
    %v131 = vld [vmem:[%s3 + $0x8] sm:$0x7f]
    %v132 = vld [vmem:[%s5] sm:$0x1]
    %v133 = vld [vmem:[%s1] sm:$0x1]
    %vm134 = vcmask 121856
    %v136 = vsel %vm134, %v133, 0
    %vm138 = vcmask 1046528
    %v140 = vsel %vm138, %v131, 0
    %142 = vmatprep.subr.mxu0 0.0
    %143 = vmatpush1.msra.mxu0 %v130
    %144 = vmatprep.subr.mxu0 0.0
    %145 = vmatpush1.msra.mxu0 %v140
    %146 = vmatprep.subr.mxu0 0.0
    %147 = vmatpush1.msra.mxu0 0.0
    %148 = vmatprep.subr.mxu0 0.0
    %149 = vmatpush1.msra.mxu0 0.0
    %150 = vmatprep.subr.mxu0 0.0
    %151 = vmatpush1.msra.mxu0 0.0
    %152 = vmatprep.subr.mxu0 0.0
    %153 = vmatpush1.msra.mxu0 0.0
    %154 = vmatprep.subr.mxu0 0.0
    %155 = vmatpush1.msra.mxu0 0.0
    %156 = vmatprep.subr.mxu0 0.0
    %157 = vmatpush1.msra.mxu0 0.0
    %158 = vmatprep.subr.mxu0 0.0
    %159 = vmatpush1.msra.mxu0 0.0
    %160 = vmatprep.subr.mxu0 0.0
    %161 = vmatpush1.msra.mxu0 0.0
    %162 = vmatprep.subr.mxu0 0.0
    %163 = vmatpush1.msra.mxu0 0.0
    %164 = vmatprep.subr.mxu0 0.0
    %165 = vmatpush1.msra.mxu0 0.0
    %166 = vmatprep.subr.mxu0 0.0
    %167 = vmatpush1.msra.mxu0 0.0
    %168 = vmatprep.subr.mxu0 0.0
    %169 = vmatpush1.msra.mxu0 0.0
    %170 = vmatprep.subr.mxu0 0.0
    %171 = vmatpush1.msra.mxu0 0.0
    %172 = vmatprep.subr.mxu0 0.0
    %173 = vmatpush1.msra.mxu0 0.0
    %174 = vmatprep.subr.mxu0 0.0
    %175 = vmatpush1.msra.mxu0 0.0
    %176 = vmatprep.subr.mxu0 0.0
    %177 = vmatpush1.msra.mxu0 0.0
    %178 = vmatprep.subr.mxu0 0.0
    %179 = vmatpush1.msra.mxu0 0.0
    %180 = vmatprep.subr.mxu0 0.0
    %181 = vmatpush1.msra.mxu0 0.0
    %182 = vmatprep.subr.mxu0 0.0
    %183 = vmatpush1.msra.mxu0 0.0
    %184 = vmatprep.subr.mxu0 0.0
    %185 = vmatpush1.msra.mxu0 0.0
    %186 = vmatprep.subr.mxu0 0.0
    %187 = vmatpush1.msra.mxu0 0.0
    %188 = vmatprep.subr.mxu0 0.0
    %189 = vmatpush1.msra.mxu0 0.0
    %190 = vmatprep.subr.mxu0 0.0
    %191 = vmatpush1.msra.mxu0 0.0
    %192 = vmatprep.subr.mxu0 0.0
    %193 = vmatpush1.msra.mxu0 0.0
    %194 = vmatprep.subr.mxu0 0.0
    %195 = vmatpush1.msra.mxu0 0.0
    %196 = vmatprep.subr.mxu0 0.0
    %197 = vmatpush1.msra.mxu0 0.0
    %198 = vmatprep.subr.mxu0 0.0
    %199 = vmatpush1.msra.mxu0 0.0
    %200 = vmatprep.subr.mxu0 0.0
    %201 = vmatpush1.msra.mxu0 0.0
    %202 = vmatprep.subr.mxu0 0.0
    %203 = vmatpush1.msra.mxu0 0.0
    %204 = vmatprep.subr.mxu0 0.0
    %205 = vmatpush1.msra.mxu0 0.0
    %206 = vmatprep.mubr.f32.mxu0 0.0
    %207 = vmatmul.mubr.f32.gmra.mrb[0].mxu0 %v136
    %v208 = vpop.f32.mrb[0].mxu0
    %v209 = vadd.f32 %v132, %v208
    %v210 = vpop.f32.mrb[0].mxu0
    %211 = vdwg.mxu0
    %v212 = vadd.f32 %v127, %v209
    %v213 = vxor.u32 %v212, 2147483648
    %v214 = vmul.f32 %v213, 1.442695
    %v215 = vpow.pop %v214
    %v216 = vadd.f32 %v215, 1.0
    %v217 = vrcp.pop %v216
    %v218 = vmul.f32 1.0, %v217
    %220 = vrot.lane.b32.xlu0 %v209, 98
    %v221 = vpop.permute.xlu0 %220
    %v223 = vmul.f32 %v218, %v221
    %225 = vrot.lane.b32.xlu0 %v223, 30
    %v226 = vpop.permute.xlu0 %225
    %v228 = vadd.f32 %v127, %v226
    %v229 = vtanh.pop %v228
    %v230 = vsub.f32 1.0, %v218
    %232 = vrot.lane.b32.xlu0 %v229, 113
    %v233 = vpop.permute.xlu0 %232
    %v235 = vmul.f32 %v230, %v233
    %v236 = vlaneseq
    %v237 = vshrl.u32 %v236, 7
    %v238 = vsub.s32 0, %v237
    %v239 = vrot.slane %v133, %v238
    %240 = vrot.lane.b32.xlu0 %v239, 15
    %v241 = vpop.permute.xlu0 %240
    %v243 = vmul.f32 %v218, %v241
    %v244 = vadd.f32 %v235, %v243
    %246 = vrot.lane.b32.xlu0 %v244, 113
    %v247 = vpop.permute.xlu0 %246
    %v248 = vsel %vm134, %v247, 0
    %250 = vmatprep.subr.mxu0 0.0
    %251 = vmatpush1.msra.mxu0 %v130
    %252 = vmatprep.subr.mxu0 0.0
    %253 = vmatpush1.msra.mxu0 %v140
    %254 = vmatprep.subr.mxu0 0.0
    %255 = vmatpush1.msra.mxu0 0.0
    %256 = vmatprep.subr.mxu0 0.0
    %257 = vmatpush1.msra.mxu0 0.0
    %258 = vmatprep.subr.mxu0 0.0
    %259 = vmatpush1.msra.mxu0 0.0
    %260 = vmatprep.subr.mxu0 0.0
    %261 = vmatpush1.msra.mxu0 0.0
    %262 = vmatprep.subr.mxu0 0.0
    %263 = vmatpush1.msra.mxu0 0.0
    %264 = vmatprep.subr.mxu0 0.0
    %265 = vmatpush1.msra.mxu0 0.0
    %266 = vmatprep.subr.mxu0 0.0
    %267 = vmatpush1.msra.mxu0 0.0
    %268 = vmatprep.subr.mxu0 0.0
    %269 = vmatpush1.msra.mxu0 0.0
    %270 = vmatprep.subr.mxu0 0.0
    %271 = vmatpush1.msra.mxu0 0.0
    %272 = vmatprep.subr.mxu0 0.0
    %273 = vmatpush1.msra.mxu0 0.0
    %274 = vmatprep.subr.mxu0 0.0
    %275 = vmatpush1.msra.mxu0 0.0
    %276 = vmatprep.subr.mxu0 0.0
    %277 = vmatpush1.msra.mxu0 0.0
    %278 = vmatprep.subr.mxu0 0.0
    %279 = vmatpush1.msra.mxu0 0.0
    %280 = vmatprep.subr.mxu0 0.0
    %281 = vmatpush1.msra.mxu0 0.0
    %282 = vmatprep.subr.mxu0 0.0
    %283 = vmatpush1.msra.mxu0 0.0
    %284 = vmatprep.subr.mxu0 0.0
    %285 = vmatpush1.msra.mxu0 0.0
    %286 = vmatprep.subr.mxu0 0.0
    %287 = vmatpush1.msra.mxu0 0.0
    %288 = vmatprep.subr.mxu0 0.0
    %289 = vmatpush1.msra.mxu0 0.0
    %290 = vmatprep.subr.mxu0 0.0
    %291 = vmatpush1.msra.mxu0 0.0
    %292 = vmatprep.subr.mxu0 0.0
    %293 = vmatpush1.msra.mxu0 0.0
    %294 = vmatprep.subr.mxu0 0.0
    %295 = vmatpush1.msra.mxu0 0.0
    %296 = vmatprep.subr.mxu0 0.0
    %297 = vmatpush1.msra.mxu0 0.0
    %298 = vmatprep.subr.mxu0 0.0
    %299 = vmatpush1.msra.mxu0 0.0
    %300 = vmatprep.subr.mxu0 0.0
    %301 = vmatpush1.msra.mxu0 0.0
    %302 = vmatprep.subr.mxu0 0.0
    %303 = vmatpush1.msra.mxu0 0.0
    %304 = vmatprep.subr.mxu0 0.0
    %305 = vmatpush1.msra.mxu0 0.0
    %306 = vmatprep.subr.mxu0 0.0
    %307 = vmatpush1.msra.mxu0 0.0
    %308 = vmatprep.subr.mxu0 0.0
    %309 = vmatpush1.msra.mxu0 0.0
    %310 = vmatprep.subr.mxu0 0.0
    %311 = vmatpush1.msra.mxu0 0.0
    %312 = vmatprep.subr.mxu0 0.0
    %313 = vmatpush1.msra.mxu0 0.0
    %314 = vmatprep.mubr.f32.mxu0 0.0
    %315 = vmatmul.mubr.f32.gmra.mrb[0].mxu0 %v248
    %v316 = vpop.f32.mrb[0].mxu0
    %v317 = vadd.f32 %v132, %v316
    %v318 = vpop.f32.mrb[0].mxu0
    %319 = vdwg.mxu0
    %v321 = vrot.slane %v317, 7
    %v323 = vadd.f32 %v127, %v321
    %v324 = vxor.u32 %v323, 2147483648
    %v325 = vmul.f32 %v324, 1.442695
    %v326 = vpow.pop %v325
    %v327 = vadd.f32 %v326, 1.0
    %v328 = vrcp.pop %v327
    %v329 = vmul.f32 1.0, %v328
    %330 = vrot.lane.b32.xlu0 %v321, 98
    %v331 = vpop.permute.xlu0 %330
    %v333 = vmul.f32 %v329, %v331
    %335 = vrot.lane.b32.xlu0 %v333, 30
    %v336 = vpop.permute.xlu0 %335
    %v338 = vadd.f32 %v127, %v336
    %v339 = vtanh.pop %v338
    %v340 = vsub.f32 1.0, %v329
    %342 = vrot.lane.b32.xlu0 %v339, 113
    %v343 = vpop.permute.xlu0 %342
    %v345 = vmul.f32 %v340, %v343
    %v346 = vrot.slane %v244, 7
    %v348 = vmul.f32 %v329, %v346
    %v349 = vadd.f32 %v345, %v348
    %v351 = vrot.slane %v349, 1
    %352 = vrot.lane.b32.xlu0 %v351, 113
    %v353 = vpop.permute.xlu0 %352
    %v354 = vsel %vm134, %v353, 0
    %356 = vmatprep.subr.mxu0 0.0
    %357 = vmatpush1.msra.mxu0 %v130
    %358 = vmatprep.subr.mxu0 0.0
    %359 = vmatpush1.msra.mxu0 %v140
    %360 = vmatprep.subr.mxu0 0.0
    %361 = vmatpush1.msra.mxu0 0.0
    %362 = vmatprep.subr.mxu0 0.0
    %363 = vmatpush1.msra.mxu0 0.0
    %364 = vmatprep.subr.mxu0 0.0
    %365 = vmatpush1.msra.mxu0 0.0
    %366 = vmatprep.subr.mxu0 0.0
    %367 = vmatpush1.msra.mxu0 0.0
    %368 = vmatprep.subr.mxu0 0.0
    %369 = vmatpush1.msra.mxu0 0.0
    %370 = vmatprep.subr.mxu0 0.0
    %371 = vmatpush1.msra.mxu0 0.0
    %372 = vmatprep.subr.mxu0 0.0
    %373 = vmatpush1.msra.mxu0 0.0
    %374 = vmatprep.subr.mxu0 0.0
    %375 = vmatpush1.msra.mxu0 0.0
    %376 = vmatprep.subr.mxu0 0.0
    %377 = vmatpush1.msra.mxu0 0.0
    %378 = vmatprep.subr.mxu0 0.0
    %379 = vmatpush1.msra.mxu0 0.0
    %380 = vmatprep.subr.mxu0 0.0
    %381 = vmatpush1.msra.mxu0 0.0
    %382 = vmatprep.subr.mxu0 0.0
    %383 = vmatpush1.msra.mxu0 0.0
    %384 = vmatprep.subr.mxu0 0.0
    %385 = vmatpush1.msra.mxu0 0.0
    %386 = vmatprep.subr.mxu0 0.0
    %387 = vmatpush1.msra.mxu0 0.0
    %388 = vmatprep.subr.mxu0 0.0
    %389 = vmatpush1.msra.mxu0 0.0
    %390 = vmatprep.subr.mxu0 0.0
    %391 = vmatpush1.msra.mxu0 0.0
    %392 = vmatprep.subr.mxu0 0.0
    %393 = vmatpush1.msra.mxu0 0.0
    %394 = vmatprep.subr.mxu0 0.0
    %395 = vmatpush1.msra.mxu0 0.0
    %396 = vmatprep.subr.mxu0 0.0
    %397 = vmatpush1.msra.mxu0 0.0
    %398 = vmatprep.subr.mxu0 0.0
    %399 = vmatpush1.msra.mxu0 0.0
    %400 = vmatprep.subr.mxu0 0.0
    %401 = vmatpush1.msra.mxu0 0.0
    %402 = vmatprep.subr.mxu0 0.0
    %403 = vmatpush1.msra.mxu0 0.0
    %404 = vmatprep.subr.mxu0 0.0
    %405 = vmatpush1.msra.mxu0 0.0
    %406 = vmatprep.subr.mxu0 0.0
    %407 = vmatpush1.msra.mxu0 0.0
    %408 = vmatprep.subr.mxu0 0.0
    %409 = vmatpush1.msra.mxu0 0.0
    %410 = vmatprep.subr.mxu0 0.0
    %411 = vmatpush1.msra.mxu0 0.0
    %412 = vmatprep.subr.mxu0 0.0
    %413 = vmatpush1.msra.mxu0 0.0
    %414 = vmatprep.subr.mxu0 0.0
    %415 = vmatpush1.msra.mxu0 0.0
    %416 = vmatprep.subr.mxu0 0.0
    %417 = vmatpush1.msra.mxu0 0.0
    %418 = vmatprep.subr.mxu0 0.0
    %419 = vmatpush1.msra.mxu0 0.0
    %420 = vmatprep.mubr.f32.mxu0 0.0
    %421 = vmatmul.mubr.f32.gmra.mrb[0].mxu0 %v354
    %v422 = vpop.f32.mrb[0].mxu0
    %v423 = vadd.f32 %v132, %v422
    %v424 = vpop.f32.mrb[0].mxu0
    %425 = vdwg.mxu0
    %v427 = vrot.slane %v423, 6
    %v429 = vadd.f32 %v127, %v427
    %v430 = vxor.u32 %v429, 2147483648
    %v431 = vmul.f32 %v430, 1.442695
    %v432 = vpow.pop %v431
    %v433 = vadd.f32 %v432, 1.0
    %v434 = vrcp.pop %v433
    %v435 = vmul.f32 1.0, %v434
    %436 = vrot.lane.b32.xlu0 %v427, 98
    %v437 = vpop.permute.xlu0 %436
    %v439 = vmul.f32 %v435, %v437
    %441 = vrot.lane.b32.xlu0 %v439, 30
    %v442 = vpop.permute.xlu0 %441
    %v444 = vadd.f32 %v127, %v442
    %v445 = vtanh.pop %v444
    %v446 = vsub.f32 1.0, %v435
    %448 = vrot.lane.b32.xlu0 %v445, 113
    %v449 = vpop.permute.xlu0 %448
    %v451 = vmul.f32 %v446, %v449
    %v452 = vrot.slane %v349, 7
    %v454 = vmul.f32 %v435, %v452
    %v455 = vadd.f32 %v451, %v454
    %v457 = vrot.slane %v455, 2
    %458 = vrot.lane.b32.xlu0 %v457, 113
    %v459 = vpop.permute.xlu0 %458
    %v460 = vsel %vm134, %v459, 0
    %462 = vmatprep.subr.mxu0 0.0
    %463 = vmatpush1.msra.mxu0 %v130
    %464 = vmatprep.subr.mxu0 0.0
    %465 = vmatpush1.msra.mxu0 %v140
    %466 = vmatprep.subr.mxu0 0.0
    %467 = vmatpush1.msra.mxu0 0.0
    %468 = vmatprep.subr.mxu0 0.0
    %469 = vmatpush1.msra.mxu0 0.0
    %470 = vmatprep.subr.mxu0 0.0
    %471 = vmatpush1.msra.mxu0 0.0
    %472 = vmatprep.subr.mxu0 0.0
    %473 = vmatpush1.msra.mxu0 0.0
    %474 = vmatprep.subr.mxu0 0.0
    %475 = vmatpush1.msra.mxu0 0.0
    %476 = vmatprep.subr.mxu0 0.0
    %477 = vmatpush1.msra.mxu0 0.0
    %478 = vmatprep.subr.mxu0 0.0
    %479 = vmatpush1.msra.mxu0 0.0
    %480 = vmatprep.subr.mxu0 0.0
    %481 = vmatpush1.msra.mxu0 0.0
    %482 = vmatprep.subr.mxu0 0.0
    %483 = vmatpush1.msra.mxu0 0.0
    %484 = vmatprep.subr.mxu0 0.0
    %485 = vmatpush1.msra.mxu0 0.0
    %486 = vmatprep.subr.mxu0 0.0
    %487 = vmatpush1.msra.mxu0 0.0
    %488 = vmatprep.subr.mxu0 0.0
    %489 = vmatpush1.msra.mxu0 0.0
    %490 = vmatprep.subr.mxu0 0.0
    %491 = vmatpush1.msra.mxu0 0.0
    %492 = vmatprep.subr.mxu0 0.0
    %493 = vmatpush1.msra.mxu0 0.0
    %494 = vmatprep.subr.mxu0 0.0
    %495 = vmatpush1.msra.mxu0 0.0
    %496 = vmatprep.subr.mxu0 0.0
    %497 = vmatpush1.msra.mxu0 0.0
    %498 = vmatprep.subr.mxu0 0.0
    %499 = vmatpush1.msra.mxu0 0.0
    %500 = vmatprep.subr.mxu0 0.0
    %501 = vmatpush1.msra.mxu0 0.0
    %502 = vmatprep.subr.mxu0 0.0
    %503 = vmatpush1.msra.mxu0 0.0
    %504 = vmatprep.subr.mxu0 0.0
    %505 = vmatpush1.msra.mxu0 0.0
    %506 = vmatprep.subr.mxu0 0.0
    %507 = vmatpush1.msra.mxu0 0.0
    %508 = vmatprep.subr.mxu0 0.0
    %509 = vmatpush1.msra.mxu0 0.0
    %510 = vmatprep.subr.mxu0 0.0
    %511 = vmatpush1.msra.mxu0 0.0
    %512 = vmatprep.subr.mxu0 0.0
    %513 = vmatpush1.msra.mxu0 0.0
    %514 = vmatprep.subr.mxu0 0.0
    %515 = vmatpush1.msra.mxu0 0.0
    %516 = vmatprep.subr.mxu0 0.0
    %517 = vmatpush1.msra.mxu0 0.0
    %518 = vmatprep.subr.mxu0 0.0
    %519 = vmatpush1.msra.mxu0 0.0
    %520 = vmatprep.subr.mxu0 0.0
    %521 = vmatpush1.msra.mxu0 0.0
    %522 = vmatprep.subr.mxu0 0.0
    %523 = vmatpush1.msra.mxu0 0.0
    %524 = vmatprep.subr.mxu0 0.0
    %525 = vmatpush1.msra.mxu0 0.0
    %526 = vmatprep.mubr.f32.mxu0 0.0
    %527 = vmatmul.mubr.f32.gmra.mrb[0].mxu0 %v460
    %v528 = vpop.f32.mrb[0].mxu0
    %v529 = vadd.f32 %v132, %v528
    %v530 = vpop.f32.mrb[0].mxu0
    %531 = vdwg.mxu0
    %v533 = vrot.slane %v529, 5
    %v535 = vadd.f32 %v127, %v533
    %v536 = vxor.u32 %v535, 2147483648
    %v537 = vmul.f32 %v536, 1.442695
    %v538 = vpow.pop %v537
    %v539 = vadd.f32 %v538, 1.0
    %v540 = vrcp.pop %v539
    %v541 = vmul.f32 1.0, %v540
    %542 = vrot.lane.b32.xlu0 %v533, 98
    %v543 = vpop.permute.xlu0 %542
    %v545 = vmul.f32 %v541, %v543
    %547 = vrot.lane.b32.xlu0 %v545, 30
    %v548 = vpop.permute.xlu0 %547
    %v550 = vadd.f32 %v127, %v548
    %v551 = vtanh.pop %v550
    %v552 = vsub.f32 1.0, %v541
    %554 = vrot.lane.b32.xlu0 %v551, 113
    %v555 = vpop.permute.xlu0 %554
    %v557 = vmul.f32 %v552, %v555
    %v558 = vrot.slane %v455, 7
    %v560 = vmul.f32 %v541, %v558
    %v561 = vadd.f32 %v557, %v560
    %v563 = vrot.slane %v561, 3
    %564 = vrot.lane.b32.xlu0 %v563, 113
    %v565 = vpop.permute.xlu0 %564
    %v566 = vsel %vm134, %v565, 0
    %568 = vmatprep.subr.mxu0 0.0
    %569 = vmatpush1.msra.mxu0 %v130
    %570 = vmatprep.subr.mxu0 0.0
    %571 = vmatpush1.msra.mxu0 %v140
    %572 = vmatprep.subr.mxu0 0.0
    %573 = vmatpush1.msra.mxu0 0.0
    %574 = vmatprep.subr.mxu0 0.0
    %575 = vmatpush1.msra.mxu0 0.0
    %576 = vmatprep.subr.mxu0 0.0
    %577 = vmatpush1.msra.mxu0 0.0
    %578 = vmatprep.subr.mxu0 0.0
    %579 = vmatpush1.msra.mxu0 0.0
    %580 = vmatprep.subr.mxu0 0.0
    %581 = vmatpush1.msra.mxu0 0.0
    %582 = vmatprep.subr.mxu0 0.0
    %583 = vmatpush1.msra.mxu0 0.0
    %584 = vmatprep.subr.mxu0 0.0
    %585 = vmatpush1.msra.mxu0 0.0
    %586 = vmatprep.subr.mxu0 0.0
    %587 = vmatpush1.msra.mxu0 0.0
    %588 = vmatprep.subr.mxu0 0.0
    %589 = vmatpush1.msra.mxu0 0.0
    %590 = vmatprep.subr.mxu0 0.0
    %591 = vmatpush1.msra.mxu0 0.0
    %592 = vmatprep.subr.mxu0 0.0
    %593 = vmatpush1.msra.mxu0 0.0
    %594 = vmatprep.subr.mxu0 0.0
    %595 = vmatpush1.msra.mxu0 0.0
    %596 = vmatprep.subr.mxu0 0.0
    %597 = vmatpush1.msra.mxu0 0.0
    %598 = vmatprep.subr.mxu0 0.0
    %599 = vmatpush1.msra.mxu0 0.0
    %600 = vmatprep.subr.mxu0 0.0
    %601 = vmatpush1.msra.mxu0 0.0
    %602 = vmatprep.subr.mxu0 0.0
    %603 = vmatpush1.msra.mxu0 0.0
    %604 = vmatprep.subr.mxu0 0.0
    %605 = vmatpush1.msra.mxu0 0.0
    %606 = vmatprep.subr.mxu0 0.0
    %607 = vmatpush1.msra.mxu0 0.0
    %608 = vmatprep.subr.mxu0 0.0
    %609 = vmatpush1.msra.mxu0 0.0
    %610 = vmatprep.subr.mxu0 0.0
    %611 = vmatpush1.msra.mxu0 0.0
    %612 = vmatprep.subr.mxu0 0.0
    %613 = vmatpush1.msra.mxu0 0.0
    %614 = vmatprep.subr.mxu0 0.0
    %615 = vmatpush1.msra.mxu0 0.0
    %616 = vmatprep.subr.mxu0 0.0
    %617 = vmatpush1.msra.mxu0 0.0
    %618 = vmatprep.subr.mxu0 0.0
    %619 = vmatpush1.msra.mxu0 0.0
    %620 = vmatprep.subr.mxu0 0.0
    %621 = vmatpush1.msra.mxu0 0.0
    %622 = vmatprep.subr.mxu0 0.0
    %623 = vmatpush1.msra.mxu0 0.0
    %624 = vmatprep.subr.mxu0 0.0
    %625 = vmatpush1.msra.mxu0 0.0
    %626 = vmatprep.subr.mxu0 0.0
    %627 = vmatpush1.msra.mxu0 0.0
    %628 = vmatprep.subr.mxu0 0.0
    %629 = vmatpush1.msra.mxu0 0.0
    %630 = vmatprep.subr.mxu0 0.0
    %631 = vmatpush1.msra.mxu0 0.0
    %632 = vmatprep.mubr.f32.mxu0 0.0
    %633 = vmatmul.mubr.f32.gmra.mrb[0].mxu0 %v566
    %v634 = vpop.f32.mrb[0].mxu0
    %v635 = vadd.f32 %v132, %v634
    %v636 = vpop.f32.mrb[0].mxu0
    %637 = vdwg.mxu0
    %v639 = vrot.slane %v635, 4
    %v641 = vadd.f32 %v127, %v639
    %v642 = vxor.u32 %v641, 2147483648
    %v643 = vmul.f32 %v642, 1.442695
    %v644 = vpow.pop %v643
    %v645 = vadd.f32 %v644, 1.0
    %v646 = vrcp.pop %v645
    %v647 = vmul.f32 1.0, %v646
    %648 = vrot.lane.b32.xlu0 %v639, 98
    %v649 = vpop.permute.xlu0 %648
    %v651 = vmul.f32 %v647, %v649
    %653 = vrot.lane.b32.xlu0 %v651, 30
    %v654 = vpop.permute.xlu0 %653
    %v656 = vadd.f32 %v127, %v654
    %v657 = vtanh.pop %v656
    %v658 = vsub.f32 1.0, %v647
    %660 = vrot.lane.b32.xlu0 %v657, 113
    %v661 = vpop.permute.xlu0 %660
    %v663 = vmul.f32 %v658, %v661
    %v664 = vrot.slane %v561, 7
    %v666 = vmul.f32 %v647, %v664
    %v667 = vadd.f32 %v663, %v666
    %v669 = vrot.slane %v667, 4
    %670 = vrot.lane.b32.xlu0 %v669, 113
    %v671 = vpop.permute.xlu0 %670
    %v672 = vsel %vm134, %v671, 0
    %674 = vmatprep.subr.mxu0 0.0
    %675 = vmatpush1.msra.mxu0 %v130
    %676 = vmatprep.subr.mxu0 0.0
    %677 = vmatpush1.msra.mxu0 %v140
    %678 = vmatprep.subr.mxu0 0.0
    %679 = vmatpush1.msra.mxu0 0.0
    %680 = vmatprep.subr.mxu0 0.0
    %681 = vmatpush1.msra.mxu0 0.0
    %682 = vmatprep.subr.mxu0 0.0
    %683 = vmatpush1.msra.mxu0 0.0
    %684 = vmatprep.subr.mxu0 0.0
    %685 = vmatpush1.msra.mxu0 0.0
    %686 = vmatprep.subr.mxu0 0.0
    %687 = vmatpush1.msra.mxu0 0.0
    %688 = vmatprep.subr.mxu0 0.0
    %689 = vmatpush1.msra.mxu0 0.0
    %690 = vmatprep.subr.mxu0 0.0
    %691 = vmatpush1.msra.mxu0 0.0
    %692 = vmatprep.subr.mxu0 0.0
    %693 = vmatpush1.msra.mxu0 0.0
    %694 = vmatprep.subr.mxu0 0.0
    %695 = vmatpush1.msra.mxu0 0.0
    %696 = vmatprep.subr.mxu0 0.0
    %697 = vmatpush1.msra.mxu0 0.0
    %698 = vmatprep.subr.mxu0 0.0
    %699 = vmatpush1.msra.mxu0 0.0
    %700 = vmatprep.subr.mxu0 0.0
    %701 = vmatpush1.msra.mxu0 0.0
    %702 = vmatprep.subr.mxu0 0.0
    %703 = vmatpush1.msra.mxu0 0.0
    %704 = vmatprep.subr.mxu0 0.0
    %705 = vmatpush1.msra.mxu0 0.0
    %706 = vmatprep.subr.mxu0 0.0
    %707 = vmatpush1.msra.mxu0 0.0
    %708 = vmatprep.subr.mxu0 0.0
    %709 = vmatpush1.msra.mxu0 0.0
    %710 = vmatprep.subr.mxu0 0.0
    %711 = vmatpush1.msra.mxu0 0.0
    %712 = vmatprep.subr.mxu0 0.0
    %713 = vmatpush1.msra.mxu0 0.0
    %714 = vmatprep.subr.mxu0 0.0
    %715 = vmatpush1.msra.mxu0 0.0
    %716 = vmatprep.subr.mxu0 0.0
    %717 = vmatpush1.msra.mxu0 0.0
    %718 = vmatprep.subr.mxu0 0.0
    %719 = vmatpush1.msra.mxu0 0.0
    %720 = vmatprep.subr.mxu0 0.0
    %721 = vmatpush1.msra.mxu0 0.0
    %722 = vmatprep.subr.mxu0 0.0
    %723 = vmatpush1.msra.mxu0 0.0
    %724 = vmatprep.subr.mxu0 0.0
    %725 = vmatpush1.msra.mxu0 0.0
    %726 = vmatprep.subr.mxu0 0.0
    %727 = vmatpush1.msra.mxu0 0.0
    %728 = vmatprep.subr.mxu0 0.0
    %729 = vmatpush1.msra.mxu0 0.0
    %730 = vmatprep.subr.mxu0 0.0
    %731 = vmatpush1.msra.mxu0 0.0
    %732 = vmatprep.subr.mxu0 0.0
    %733 = vmatpush1.msra.mxu0 0.0
    %734 = vmatprep.subr.mxu0 0.0
    %735 = vmatpush1.msra.mxu0 0.0
    %736 = vmatprep.subr.mxu0 0.0
    %737 = vmatpush1.msra.mxu0 0.0
    %738 = vmatprep.mubr.f32.mxu0 0.0
    %739 = vmatmul.mubr.f32.gmra.mrb[0].mxu0 %v672
    %v740 = vpop.f32.mrb[0].mxu0
    %v741 = vadd.f32 %v132, %v740
    %v742 = vpop.f32.mrb[0].mxu0
    %743 = vdwg.mxu0
    %v745 = vrot.slane %v741, 3
    %v747 = vadd.f32 %v127, %v745
    %v748 = vxor.u32 %v747, 2147483648
    %v749 = vmul.f32 %v748, 1.442695
    %v750 = vpow.pop %v749
    %v751 = vadd.f32 %v750, 1.0
    %v752 = vrcp.pop %v751
    %v753 = vmul.f32 1.0, %v752
    %754 = vrot.lane.b32.xlu0 %v745, 98
    %v755 = vpop.permute.xlu0 %754
    %v757 = vmul.f32 %v753, %v755
    %759 = vrot.lane.b32.xlu0 %v757, 30
    %v760 = vpop.permute.xlu0 %759
    %v762 = vadd.f32 %v127, %v760
    %v763 = vtanh.pop %v762
    %v764 = vsub.f32 1.0, %v753
    %766 = vrot.lane.b32.xlu0 %v763, 113
    %v767 = vpop.permute.xlu0 %766
    %v769 = vmul.f32 %v764, %v767
    %v770 = vrot.slane %v667, 7
    %v772 = vmul.f32 %v753, %v770
    %v773 = vadd.f32 %v769, %v772
    %v775 = vrot.slane %v773, 5
    %776 = vrot.lane.b32.xlu0 %v775, 113
    %v777 = vpop.permute.xlu0 %776
    %v778 = vsel %vm134, %v777, 0
    %780 = vmatprep.subr.mxu0 0.0
    %781 = vmatpush1.msra.mxu0 %v130
    %782 = vmatprep.subr.mxu0 0.0
    %783 = vmatpush1.msra.mxu0 %v140
    %784 = vmatprep.subr.mxu0 0.0
    %785 = vmatpush1.msra.mxu0 0.0
    %786 = vmatprep.subr.mxu0 0.0
    %787 = vmatpush1.msra.mxu0 0.0
    %788 = vmatprep.subr.mxu0 0.0
    %789 = vmatpush1.msra.mxu0 0.0
    %790 = vmatprep.subr.mxu0 0.0
    %791 = vmatpush1.msra.mxu0 0.0
    %792 = vmatprep.subr.mxu0 0.0
    %793 = vmatpush1.msra.mxu0 0.0
    %794 = vmatprep.subr.mxu0 0.0
    %795 = vmatpush1.msra.mxu0 0.0
    %796 = vmatprep.subr.mxu0 0.0
    %797 = vmatpush1.msra.mxu0 0.0
    %798 = vmatprep.subr.mxu0 0.0
    %799 = vmatpush1.msra.mxu0 0.0
    %800 = vmatprep.subr.mxu0 0.0
    %801 = vmatpush1.msra.mxu0 0.0
    %802 = vmatprep.subr.mxu0 0.0
    %803 = vmatpush1.msra.mxu0 0.0
    %804 = vmatprep.subr.mxu0 0.0
    %805 = vmatpush1.msra.mxu0 0.0
    %806 = vmatprep.subr.mxu0 0.0
    %807 = vmatpush1.msra.mxu0 0.0
    %808 = vmatprep.subr.mxu0 0.0
    %809 = vmatpush1.msra.mxu0 0.0
    %810 = vmatprep.subr.mxu0 0.0
    %811 = vmatpush1.msra.mxu0 0.0
    %812 = vmatprep.subr.mxu0 0.0
    %813 = vmatpush1.msra.mxu0 0.0
    %814 = vmatprep.subr.mxu0 0.0
    %815 = vmatpush1.msra.mxu0 0.0
    %816 = vmatprep.subr.mxu0 0.0
    %817 = vmatpush1.msra.mxu0 0.0
    %818 = vmatprep.subr.mxu0 0.0
    %819 = vmatpush1.msra.mxu0 0.0
    %820 = vmatprep.subr.mxu0 0.0
    %821 = vmatpush1.msra.mxu0 0.0
    %822 = vmatprep.subr.mxu0 0.0
    %823 = vmatpush1.msra.mxu0 0.0
    %824 = vmatprep.subr.mxu0 0.0
    %825 = vmatpush1.msra.mxu0 0.0
    %826 = vmatprep.subr.mxu0 0.0
    %827 = vmatpush1.msra.mxu0 0.0
    %828 = vmatprep.subr.mxu0 0.0
    %829 = vmatpush1.msra.mxu0 0.0
    %830 = vmatprep.subr.mxu0 0.0
    %831 = vmatpush1.msra.mxu0 0.0
    %832 = vmatprep.subr.mxu0 0.0
    %833 = vmatpush1.msra.mxu0 0.0
    %834 = vmatprep.subr.mxu0 0.0
    %835 = vmatpush1.msra.mxu0 0.0
    %836 = vmatprep.subr.mxu0 0.0
    %837 = vmatpush1.msra.mxu0 0.0
    %838 = vmatprep.subr.mxu0 0.0
    %839 = vmatpush1.msra.mxu0 0.0
    %840 = vmatprep.subr.mxu0 0.0
    %841 = vmatpush1.msra.mxu0 0.0
    %842 = vmatprep.subr.mxu0 0.0
    %843 = vmatpush1.msra.mxu0 0.0
    %844 = vmatprep.mubr.f32.mxu0 0.0
    %845 = vmatmul.mubr.f32.gmra.mrb[0].mxu0 %v778
    %v846 = vpop.f32.mrb[0].mxu0
    %v847 = vadd.f32 %v132, %v846
    %v848 = vpop.f32.mrb[0].mxu0
    %849 = vdwg.mxu0
    %v851 = vrot.slane %v847, 2
    %v853 = vadd.f32 %v127, %v851
    %v854 = vxor.u32 %v853, 2147483648
    %v855 = vmul.f32 %v854, 1.442695
    %v856 = vpow.pop %v855
    %v857 = vadd.f32 %v856, 1.0
    %v858 = vrcp.pop %v857
    %v859 = vmul.f32 1.0, %v858
    %860 = vrot.lane.b32.xlu0 %v851, 98
    %v861 = vpop.permute.xlu0 %860
    %v863 = vmul.f32 %v859, %v861
    %865 = vrot.lane.b32.xlu0 %v863, 30
    %v866 = vpop.permute.xlu0 %865
    %v868 = vadd.f32 %v127, %v866
    %v869 = vtanh.pop %v868
    %v870 = vsub.f32 1.0, %v859
    %872 = vrot.lane.b32.xlu0 %v869, 113
    %v873 = vpop.permute.xlu0 %872
    %v875 = vmul.f32 %v870, %v873
    %v876 = vrot.slane %v773, 7
    %v878 = vmul.f32 %v859, %v876
    %v879 = vadd.f32 %v875, %v878
    %v881 = vrot.slane %v879, 6
    %882 = vrot.lane.b32.xlu0 %v881, 113
    %v883 = vpop.permute.xlu0 %882
    %v884 = vsel %vm134, %v883, 0
    %886 = vmatprep.subr.mxu0 0.0
    %887 = vmatpush1.msra.mxu0 %v130
    %888 = vmatprep.subr.mxu0 0.0
    %889 = vmatpush1.msra.mxu0 %v140
    %890 = vmatprep.subr.mxu0 0.0
    %891 = vmatpush1.msra.mxu0 0.0
    %892 = vmatprep.subr.mxu0 0.0
    %893 = vmatpush1.msra.mxu0 0.0
    %894 = vmatprep.subr.mxu0 0.0
    %895 = vmatpush1.msra.mxu0 0.0
    %896 = vmatprep.subr.mxu0 0.0
    %897 = vmatpush1.msra.mxu0 0.0
    %898 = vmatprep.subr.mxu0 0.0
    %899 = vmatpush1.msra.mxu0 0.0
    %900 = vmatprep.subr.mxu0 0.0
    %901 = vmatpush1.msra.mxu0 0.0
    %902 = vmatprep.subr.mxu0 0.0
    %903 = vmatpush1.msra.mxu0 0.0
    %904 = vmatprep.subr.mxu0 0.0
    %905 = vmatpush1.msra.mxu0 0.0
    %906 = vmatprep.subr.mxu0 0.0
    %907 = vmatpush1.msra.mxu0 0.0
    %908 = vmatprep.subr.mxu0 0.0
    %909 = vmatpush1.msra.mxu0 0.0
    %910 = vmatprep.subr.mxu0 0.0
    %911 = vmatpush1.msra.mxu0 0.0
    %912 = vmatprep.subr.mxu0 0.0
    %913 = vmatpush1.msra.mxu0 0.0
    %914 = vmatprep.subr.mxu0 0.0
    %915 = vmatpush1.msra.mxu0 0.0
    %916 = vmatprep.subr.mxu0 0.0
    %917 = vmatpush1.msra.mxu0 0.0
    %918 = vmatprep.subr.mxu0 0.0
    %919 = vmatpush1.msra.mxu0 0.0
    %920 = vmatprep.subr.mxu0 0.0
    %921 = vmatpush1.msra.mxu0 0.0
    %922 = vmatprep.subr.mxu0 0.0
    %923 = vmatpush1.msra.mxu0 0.0
    %924 = vmatprep.subr.mxu0 0.0
    %925 = vmatpush1.msra.mxu0 0.0
    %926 = vmatprep.subr.mxu0 0.0
    %927 = vmatpush1.msra.mxu0 0.0
    %928 = vmatprep.subr.mxu0 0.0
    %929 = vmatpush1.msra.mxu0 0.0
    %930 = vmatprep.subr.mxu0 0.0
    %931 = vmatpush1.msra.mxu0 0.0
    %932 = vmatprep.subr.mxu0 0.0
    %933 = vmatpush1.msra.mxu0 0.0
    %934 = vmatprep.subr.mxu0 0.0
    %935 = vmatpush1.msra.mxu0 0.0
    %936 = vmatprep.subr.mxu0 0.0
    %937 = vmatpush1.msra.mxu0 0.0
    %938 = vmatprep.subr.mxu0 0.0
    %939 = vmatpush1.msra.mxu0 0.0
    %940 = vmatprep.subr.mxu0 0.0
    %941 = vmatpush1.msra.mxu0 0.0
    %942 = vmatprep.subr.mxu0 0.0
    %943 = vmatpush1.msra.mxu0 0.0
    %944 = vmatprep.subr.mxu0 0.0
    %945 = vmatpush1.msra.mxu0 0.0
    %946 = vmatprep.subr.mxu0 0.0
    %947 = vmatpush1.msra.mxu0 0.0
    %948 = vmatprep.subr.mxu0 0.0
    %949 = vmatpush1.msra.mxu0 0.0
    %950 = vmatprep.mubr.f32.mxu0 0.0
    %951 = vmatmul.mubr.f32.gmra.mrb[0].mxu0 %v884
    %v952 = vpop.f32.mrb[0].mxu0
    %v953 = vadd.f32 %v132, %v952
    %v954 = vpop.f32.mrb[0].mxu0
    %955 = vdwg.mxu0
    %v957 = vrot.slane %v953, 1
    %v959 = vadd.f32 %v127, %v957
    %v960 = vxor.u32 %v959, 2147483648
    %v961 = vmul.f32 %v960, 1.442695
    %v962 = vpow.pop %v961
    %v963 = vadd.f32 %v962, 1.0
    %v964 = vrcp.pop %v963
    %v965 = vmul.f32 1.0, %v964
    %966 = vrot.lane.b32.xlu0 %v957, 98
    %v967 = vpop.permute.xlu0 %966
    %v969 = vmul.f32 %v965, %v967
    %971 = vrot.lane.b32.xlu0 %v969, 30
    %v972 = vpop.permute.xlu0 %971
    %v974 = vadd.f32 %v127, %v972
    %v975 = vtanh.pop %v974
    %v976 = vsub.f32 1.0, %v965
    %978 = vrot.lane.b32.xlu0 %v975, 113
    %v979 = vpop.permute.xlu0 %978
    %v981 = vmul.f32 %v976, %v979
    %v982 = vrot.slane %v879, 7
    %v984 = vmul.f32 %v965, %v982
    %v985 = vadd.f32 %v981, %v984
    %vm986 = vcmask 1040384
    %v987 = vsel %vm986, %v244, %v349
    %vm988 = vcmask 1041408
    %v989 = vsel %vm988, %v987, %v455
    %vm990 = vcmask 1042432
    %v991 = vsel %vm990, %v989, %v561
    %v992 = vsel %vm56, %v991, %v667
    %vm993 = vcmask 1044480
    %v994 = vsel %vm993, %v992, %v773
    %vm995 = vcmask 1045504
    %v996 = vsel %vm995, %v994, %v879
    %v997 = vsel %vm138, %v996, %v985
    %v998 = vld [vmem:[%s6] sm:$0xff]
    %v999 = vld [vmem:[%s6 + $0x8] sm:$0x7f]
    %v1000 = vld [vmem:[%s7] sm:$0x1]
    %v1002 = vlaneseq
    %v1003 = vshrl.u32 %v1002, 7
    %v1004 = vsub.s32 0, %v1003
    %v1005 = vrot.slane %v1000, %v1004
    %1008 = vrot.lane.b32.xlu0 %v997, 113
    %v1009 = vpop.permute.xlu0 %1008
    %v1010 = vsel %vm134, %v1009, 0
    %v1013 = vsel %vm138, %v999, 0
    %1015 = vmatprep.subr.mxu0 0.0
    %1016 = vmatpush1.msra.mxu0 %v998
    %1017 = vmatprep.subr.mxu0 0.0
    %1018 = vmatpush1.msra.mxu0 %v1013
    %1019 = vmatprep.subr.mxu0 0.0
    %1020 = vmatpush1.msra.mxu0 0.0
    %1021 = vmatprep.subr.mxu0 0.0
    %1022 = vmatpush1.msra.mxu0 0.0
    %1023 = vmatprep.subr.mxu0 0.0
    %1024 = vmatpush1.msra.mxu0 0.0
    %1025 = vmatprep.subr.mxu0 0.0
    %1026 = vmatpush1.msra.mxu0 0.0
    %1027 = vmatprep.subr.mxu0 0.0
    %1028 = vmatpush1.msra.mxu0 0.0
    %1029 = vmatprep.subr.mxu0 0.0
    %1030 = vmatpush1.msra.mxu0 0.0
    %1031 = vmatprep.subr.mxu0 0.0
    %1032 = vmatpush1.msra.mxu0 0.0
    %1033 = vmatprep.subr.mxu0 0.0
    %1034 = vmatpush1.msra.mxu0 0.0
    %1035 = vmatprep.subr.mxu0 0.0
    %1036 = vmatpush1.msra.mxu0 0.0
    %1037 = vmatprep.subr.mxu0 0.0
    %1038 = vmatpush1.msra.mxu0 0.0
    %1039 = vmatprep.subr.mxu0 0.0
    %1040 = vmatpush1.msra.mxu0 0.0
    %1041 = vmatprep.subr.mxu0 0.0
    %1042 = vmatpush1.msra.mxu0 0.0
    %1043 = vmatprep.subr.mxu0 0.0
    %1044 = vmatpush1.msra.mxu0 0.0
    %1045 = vmatprep.subr.mxu0 0.0
    %1046 = vmatpush1.msra.mxu0 0.0
    %1047 = vmatprep.subr.mxu0 0.0
    %1048 = vmatpush1.msra.mxu0 0.0
    %1049 = vmatprep.subr.mxu0 0.0
    %1050 = vmatpush1.msra.mxu0 0.0
    %1051 = vmatprep.subr.mxu0 0.0
    %1052 = vmatpush1.msra.mxu0 0.0
    %1053 = vmatprep.subr.mxu0 0.0
    %1054 = vmatpush1.msra.mxu0 0.0
    %1055 = vmatprep.subr.mxu0 0.0
    %1056 = vmatpush1.msra.mxu0 0.0
    %1057 = vmatprep.subr.mxu0 0.0
    %1058 = vmatpush1.msra.mxu0 0.0
    %1059 = vmatprep.subr.mxu0 0.0
    %1060 = vmatpush1.msra.mxu0 0.0
    %1061 = vmatprep.subr.mxu0 0.0
    %1062 = vmatpush1.msra.mxu0 0.0
    %1063 = vmatprep.subr.mxu0 0.0
    %1064 = vmatpush1.msra.mxu0 0.0
    %1065 = vmatprep.subr.mxu0 0.0
    %1066 = vmatpush1.msra.mxu0 0.0
    %1067 = vmatprep.subr.mxu0 0.0
    %1068 = vmatpush1.msra.mxu0 0.0
    %1069 = vmatprep.subr.mxu0 0.0
    %1070 = vmatpush1.msra.mxu0 0.0
    %1071 = vmatprep.subr.mxu0 0.0
    %1072 = vmatpush1.msra.mxu0 0.0
    %1073 = vmatprep.subr.mxu0 0.0
    %1074 = vmatpush1.msra.mxu0 0.0
    %1075 = vmatprep.subr.mxu0 0.0
    %1076 = vmatpush1.msra.mxu0 0.0
    %1077 = vmatprep.subr.mxu0 0.0
    %1078 = vmatpush1.msra.mxu0 0.0
    %1079 = vmatprep.mubr.f32.mxu0 0.0
    %1080 = vmatmul.mubr.f32.gmra.mrb[0].mxu0 %v1010
    %v1081 = vpop.f32.mrb[0].mxu0
    %v1082 = vadd.f32 %v1005, %v1081
    %v1083 = vpop.f32.mrb[0].mxu0
    %1084 = vdwg.mxu0
    %vm1085 = vcmask 23552
    %1086 = vst.msk [vmem:[%s8] sm:$0xff] %vm1085, %v1082
    // Predicated region
    $region38: #{baseline_gru_pallas.1} parent=1 // pred_check
      _
    $region39: #{baseline_gru_pallas.1} parent=1 // pred_check_branch
      %1088 = sbr.rel (0) target = $region41
    $region40: #{baseline_gru_pallas.1} parent=1 // pred_region
      _
    $region41: #{baseline_gru_pallas.1} parent=1 // pred_fallthru
      _
    // Predicated region
    $region42: #{baseline_gru_pallas.1} parent=1 // pred_check
      _
    $region43: #{baseline_gru_pallas.1} parent=1 // pred_check_branch
      %1090 = sbr.rel (0) target = $region45
    $region44: #{baseline_gru_pallas.1} parent=1 // pred_region
      _
    $region45: #{baseline_gru_pallas.1} parent=1 // pred_fallthru
      _
    %1091 = vsyncpa [#allocation3], 1

</llo_original>
